<compile_context>
chip_gen: v7x
topology: tpu7x:2x2x1
jax: 0.10.0
libtpu: 0.0.40
codegen_flags: <defaults>
</compile_context>

<pallas_src>
import math

import jax
import jax.numpy as jnp
from jax.experimental import pallas as pl
from jax.experimental.pallas import tpu as pltpu


def _copy_kernel(src_ref, dst_ref):
    # Pure identity: materialize the parameter tile.
    dst_ref[...] = src_ref[...]


# Keep one block at ~4 MiB: with double-buffered input + output (4 live
# buffers) that is ~16 MiB of VMEM, safe on every generation incl. v7x.
_MAX_TILE_BYTES = 4 * 1024 * 1024


def param_embed_forward(node_embed, graph=None, istraining=True):
    """Pallas equivalent of ParamEmbed.forward: returns the embedding table.

    `graph` and `istraining` are accepted for signature parity and ignored,
    exactly as in the PyTorch module.
    """
    del graph, istraining  # unused by the reference forward
    num_nodes, latent_dim = node_embed.shape
    dtype = node_embed.dtype
    itemsize = jnp.dtype(dtype).itemsize
    total = num_nodes * latent_dim

    # --- Lane-dense view: last dim a multiple of 128 whenever possible. ---
    width = latent_dim
    for cand in (512, 256, 128):
        if total % cand == 0:
            width = cand
            break
    rows = total // width
    x2d = node_embed.reshape(rows, width)  # free layout plumbing (contiguous)

    # --- Row tile: as large as the VMEM budget allows, multiple of 8. ---
    budget_rows = max(1, _MAX_TILE_BYTES // (width * itemsize))
    tm = (min(rows, budget_rows) // 8) * 8
    if tm == 0:
        # Tiny table (< 8 rows): a single block equal to the full extent is
        # always legal on TPU regardless of the (8, 128) divisibility rule.
        tm = rows

    grid = (pl.cdiv(rows, tm),)

    out2d = pl.pallas_call(
        _copy_kernel,
        out_shape=jax.ShapeDtypeStruct((rows, width), dtype),
        grid=grid,
        in_specs=[pl.BlockSpec((tm, width), lambda i: (i, 0))],
        out_specs=pl.BlockSpec((tm, width), lambda i: (i, 0)),
        compiler_params=pltpu.CompilerParams(
            dimension_semantics=("parallel",),
            vmem_limit_bytes=64 * 1024 * 1024,
        ),
    )(x2d)

    # TODO(synk): in a real model, skip this kernel entirely (or use
    # input_output_aliases / buffer donation) — the forward is a pure
    # parameter return and needs zero HBM traffic.
    return out2d.reshape(num_nodes, latent_dim)


def glorot_uniform_init(key, num_nodes, latent_dim, dtype=jnp.float32):
    """Matches glorot_uniform for a 2-D tensor: limit = sqrt(6/(fan_in+fan_out))."""
    fan_in, fan_out = num_nodes, latent_dim
    limit = math.sqrt(6.0 / (fan_in + fan_out))
    return jax.random.uniform(
        key, (num_nodes, latent_dim), dtype=dtype, minval=-limit, maxval=limit
    )


if __name__ == "__main__":
    # Small deterministic shapes consistent with the module (latent_dim = 128
    # in the spec; num_nodes kept small for the demo).
    num_nodes = 64
    latent_dim = 128

    key = jax.random.PRNGKey(0)
    node_embed = glorot_uniform_init(key, num_nodes, latent_dim)

    # `graph` is ignored by the reference forward; pass a dummy placeholder.
    graph = None

    out = param_embed_forward(node_embed, graph, istraining=True)
    jax.block_until_ready(out)

    assert out.shape == (num_nodes, latent_dim)
    assert out.dtype == jnp.float32
    assert bool(jnp.array_equal(out, node_embed))

    print("KERNEL_OK")
</pallas_src>

<mosaic_0001>
module attributes {stable_mosaic.version = 11 : i64} {
  func.func @_copy_kernel(%arg0: i32, %arg1: memref<16x512xf32, #tpu.memory_space<vmem>>, %arg2: memref<16x512xf32, #tpu.memory_space<vmem>>) attributes {dimension_semantics = [#tpu.dimension_semantics<parallel>], iteration_bounds = array<i64: 1>, scalar_prefetch = 0 : i64, scratch_operands = 0 : i64, tpu.core_type = #tpu.core_type<tc>, window_params = [{transform_indices = @transform_0, window_bounds = array<i64: 16, 512>}, {transform_indices = @transform_1, window_bounds = array<i64: 16, 512>}]} {
    %c0 = arith.constant 0 : index
    %c0_0 = arith.constant 0 : index
    %0 = vector.load %arg1[%c0, %c0_0] : memref<16x512xf32, #tpu.memory_space<vmem>>, vector<16x512xf32>
    %c0_1 = arith.constant 0 : index
    %c0_2 = arith.constant 0 : index
    %1 = vector.load %arg2[%c0_1, %c0_2] : memref<16x512xf32, #tpu.memory_space<vmem>>, vector<16x512xf32>
    tpu.vector_store %arg2[%c0_1, %c0_2], %0 {strides = array<i32>} : memref<16x512xf32, #tpu.memory_space<vmem>>, vector<16x512xf32>,
    return
  }
  func.func @transform_0(%arg0: i32) -> (i32, i32) {
    %c0_i32 = arith.constant 0 : i32
    %c0_i32_0 = arith.constant 0 : i32
    return %arg0, %c0_i32 : i32, i32
  }
  func.func @transform_1(%arg0: i32) -> (i32, i32) {
    %c0_i32 = arith.constant 0 : i32
    %c0_i32_0 = arith.constant 0 : i32
    return %arg0, %c0_i32 : i32, i32
  }
}

</mosaic_0001>

<llo_original>
// kernel: tpu_custom_call.1
$region0: #{tpu_custom_call.1}
  #allocation0 [shape = 'u32[]', space=smem, size = 0x4, offset = 0x4, fixed_abs, tag = 'smem constant byte address 0x4 - core index']
  #allocation1 [shape = 'u32[144,128]{1,0:T(1,128)}', space=vmem, size = 0x12000, scoped, tag = 'internal scratch']
  %s0 = inlined_call_operand.hbm [shape: f32[16,512], index: 0, kind: input, shape index: {}]
  %s1 = inlined_call_operand.hbm [shape: f32[16,512], index: 1, kind: output, shape index: {}]
  %s2 = sld [smem:[#allocation0]]
  $region18: #{tpu_custom_call.1} parent=0
    _
  %s4 = ssub.s32 1, %s2
  %s5 = scalar_select 0, %s4, %s2
  $region1: #{tpu_custom_call.1} parent=0
    #allocation2 [shape = 'u8[32768]{0}', space=vmem, size = 0x8000, scoped, tag = 'input window, operand 0, single buffered']
    #allocation3 [shape = 's32[1]{0}', space=sflag, size = 0x4, scoped, tag = 'scoped memory for tpu_custom_call.1']
    #allocation4 [shape = 's32[1]{0}', space=sflag, size = 0x4, scoped, tag = 'scoped memory for tpu_custom_call.1']
    #allocation5 [shape = 'u8[32768]{0}', space=vmem, size = 0x8000, scoped, tag = 'output window, operand 0, single buffered']
    %6 = vsyncpa [#allocation3], 0
    %7 = vsyncpa [#allocation4], 0
    // Predicated region
    $region2: #{tpu_custom_call.1} parent=1 // pred_check
      _
    $region3: #{tpu_custom_call.1} parent=1 // pred_check_branch
      %9 = sbr.rel (0) target = $region5
    $region4: #{tpu_custom_call.1} parent=1 // pred_region
      %s11 = ssub.s32 1024, 1024
      %12 = vsyncadd [#allocation3], %s11
      %s13 = sshll.u32 [#allocation2], 4
      %s14 = int_to_ptr.vmem [resolvable:$true] %s13
      %19 = dma.hbm_to_vmem [thread:$0]  %s0, 1024, %s14, [#allocation3], 512, 512, 32
    $region5: #{tpu_custom_call.1} parent=1 // pred_fallthru
      _
    // Predicated region
    $region6: #{tpu_custom_call.1} parent=1 // pred_check
      _
    $region7: #{tpu_custom_call.1} parent=1 // pred_check_branch
      %21 = sbr.rel (0) target = $region9
    $region8: #{tpu_custom_call.1} parent=1 // pred_region
      %22 = dma.done [#allocation3], 1024
    $region9: #{tpu_custom_call.1} parent=1 // pred_fallthru
      _
    %v23 = vld [vmem:[#allocation2] sm:$0xff]
    %v24 = vld [vmem:[#allocation2 + $0x8] sm:$0xff]
    %v25 = vld [vmem:[#allocation2 + $0x10] sm:$0xff]
    %v26 = vld [vmem:[#allocation2 + $0x18] sm:$0xff]
    %v27 = vld [vmem:[#allocation2 + $0x20] sm:$0xff]
    %v28 = vld [vmem:[#allocation2 + $0x28] sm:$0xff]
    %v29 = vld [vmem:[#allocation2 + $0x30] sm:$0xff]
    %v30 = vld [vmem:[#allocation2 + $0x38] sm:$0xff]
    %31 = vst [vmem:[#allocation5] sm:$0xff] %v23
    %32 = vst [vmem:[#allocation5 + $0x8] sm:$0xff] %v24
    %33 = vst [vmem:[#allocation5 + $0x10] sm:$0xff] %v25
    %34 = vst [vmem:[#allocation5 + $0x18] sm:$0xff] %v26
    %35 = vst [vmem:[#allocation5 + $0x20] sm:$0xff] %v27
    %36 = vst [vmem:[#allocation5 + $0x28] sm:$0xff] %v28
    %37 = vst [vmem:[#allocation5 + $0x30] sm:$0xff] %v29
    %38 = vst [vmem:[#allocation5 + $0x38] sm:$0xff] %v30
    // Predicated region
    $region10: #{tpu_custom_call.1} parent=1 // pred_check
      _
    $region11: #{tpu_custom_call.1} parent=1 // pred_check_branch
      %40 = sbr.rel (0) target = $region13
    $region12: #{tpu_custom_call.1} parent=1 // pred_region
      %s42 = ssub.s32 1024, 1024
      %43 = vsyncadd [#allocation4], %s42
      %s44 = sshll.u32 [#allocation5], 4
      %s45 = int_to_ptr.vmem [resolvable:$true] %s44
      %50 = dma.vmem_to_hbm [thread:$0]  %s45, 1024, %s1, [#allocation4], 512, 512, 32
    $region13: #{tpu_custom_call.1} parent=1 // pred_fallthru
      _
    // Predicated region
    $region14: #{tpu_custom_call.1} parent=1 // pred_check
      _
    $region15: #{tpu_custom_call.1} parent=1 // pred_check_branch
      %52 = sbr.rel (0) target = $region17
    $region16: #{tpu_custom_call.1} parent=1 // pred_region
      %53 = dma.done [#allocation4], 1024
    $region17: #{tpu_custom_call.1} parent=1 // pred_fallthru
      _
    %54 = vsyncpa [#allocation3], 1
    %55 = vsyncpa [#allocation4], 1

</llo_original>
